<compile_context>
chip_gen: v5e
topology: v5e:2x2
jax: 0.10.0
libtpu: 0.0.40
codegen_flags: <defaults>
</compile_context>

<pallas_src>
import functools

import jax
import jax.numpy as jnp
from jax.experimental import pallas as pl
from jax.experimental.pallas import tpu as pltpu


def _round_up(n: int, m: int) -> int:
    return ((n + m - 1) // m) * m


def _mlp_kernel(x_ref, w1_ref, b1_ref, w2_ref, b2_ref, w3_ref, b3_ref,
                w4_ref, b4_ref, o_ref, *, mixed_head: bool):
    """Full MLP forward for one batch tile, feature-major layout.

    x_ref: [nx, TILE_B]   w_k: [out_k, in_k]   b_k: [out_k, 1]
    o_ref: [ny, TILE_B]
    fc1 -> relu -> fc2 -> relu -> fc3 -> relu -> fc4 -> head activation.
    """
    h = x_ref[...]

    h = jnp.dot(w1_ref[...], h, preferred_element_type=jnp.float32) + b1_ref[...]
    h = jnp.maximum(h, 0.0)

    h = jnp.dot(w2_ref[...], h, preferred_element_type=jnp.float32) + b2_ref[...]
    h = jnp.maximum(h, 0.0)

    h = jnp.dot(w3_ref[...], h, preferred_element_type=jnp.float32) + b3_ref[...]
    h = jnp.maximum(h, 0.0)

    z = jnp.dot(w4_ref[...], h, preferred_element_type=jnp.float32) + b4_ref[...]

    if mixed_head:
        # torch: cat([sigmoid(z[:, 0]), tanh(z[:, 1])], dim=1)
        # Here rows are the output features.  One transcendental pass:
        #   tanh(x) = 2 * sigmoid(2x) - 1
        row = jax.lax.broadcasted_iota(jnp.int32, z.shape, dimension=0)
        is_sig = row == 0
        s = jax.nn.sigmoid(jnp.where(is_sig, z, 2.0 * z))
        y = jnp.where(is_sig, s, 2.0 * s - 1.0)
    else:
        y = jax.nn.sigmoid(z)

    o_ref[...] = y.astype(o_ref.dtype)


def mlp_forward(x, params, *, tile_b_max: int = 4096):
    """x: [B, nx]. params: PyTorch-layout weights [out, in], biases [out, 1].

    Returns [B, ny] matching the PyTorch module's forward pass.
    """
    w1, b1, w2, b2, w3, b3, w4, b4 = (
        params["w1"], params["b1"], params["w2"], params["b2"],
        params["w3"], params["b3"], params["w4"], params["b4"],
    )
    B, nx = x.shape
    ny = w4.shape[0]
    mixed_head = (ny == 2)

    # Batch on the lane axis: tile is a multiple of 128, capped at tile_b_max.
    tile_b = min(tile_b_max, _round_up(max(B, 1), 128))
    b_pad = _round_up(B, tile_b)

    x_t = jnp.transpose(x)                      # [nx, B] (layout plumbing)
    if b_pad != B:
        x_t = jnp.pad(x_t, ((0, 0), (0, b_pad - B)))

    grid = (b_pad // tile_b,)

    def full_block(a):
        return pl.BlockSpec(a.shape, lambda i: (0, 0))

    weight_bytes = sum(int(p.size) * p.dtype.itemsize
                       for p in (w1, b1, w2, b2, w3, b3, w4, b4))
    flops = 2 * b_pad * sum(int(w.shape[0]) * int(w.shape[1])
                            for w in (w1, w2, w3, w4))
    bytes_accessed = b_pad * (nx + ny) * x.dtype.itemsize + weight_bytes

    kernel = functools.partial(_mlp_kernel, mixed_head=mixed_head)

    out_t = pl.pallas_call(
        kernel,
        out_shape=jax.ShapeDtypeStruct((ny, b_pad), x.dtype),
        grid=grid,
        in_specs=[
            pl.BlockSpec((nx, tile_b), lambda i: (0, i)),   # x tile, pipelined
            full_block(w1), full_block(b1),
            full_block(w2), full_block(b2),
            full_block(w3), full_block(b3),
            full_block(w4), full_block(b4),
        ],
        out_specs=pl.BlockSpec((ny, tile_b), lambda i: (0, i)),
        compiler_params=pltpu.CompilerParams(
            dimension_semantics=("parallel",)),
        cost_estimate=pl.CostEstimate(
            flops=flops,
            transcendentals=b_pad * ny,
            bytes_accessed=bytes_accessed),
    )(x_t, w1, b1, w2, b2, w3, b3, w4, b4)

    return jnp.transpose(out_t[:, :B])          # [B, ny]


def init_params(key, nx=8, ny=2, dtype=jnp.float32):
    """PyTorch-Linear-style init (uniform(-1/sqrt(in), 1/sqrt(in))).

    Weights stored PyTorch-style [out_features, in_features];
    biases stored as columns [out_features, 1] (feature-major layout).
    """
    dims = [(nx, 2 * nx), (2 * nx, 4 * nx), (4 * nx, 3 * nx), (3 * nx, ny)]
    params = {}
    for idx, (fan_in, fan_out) in enumerate(dims, start=1):
        key, kw, kb = jax.random.split(key, 3)
        bound = 1.0 / (fan_in ** 0.5)
        params[f"w{idx}"] = jax.random.uniform(
            kw, (fan_out, fan_in), dtype=dtype, minval=-bound, maxval=bound)
        params[f"b{idx}"] = jax.random.uniform(
            kb, (fan_out, 1), dtype=dtype, minval=-bound, maxval=bound)
    return params


def _reference_forward(x, params):
    """Pure-JAX reference of the same forward pass (row-major layout)."""
    h = jnp.maximum(x @ params["w1"].T + params["b1"].T, 0.0)
    h = jnp.maximum(h @ params["w2"].T + params["b2"].T, 0.0)
    h = jnp.maximum(h @ params["w3"].T + params["b3"].T, 0.0)
    z = h @ params["w4"].T + params["b4"].T
    if z.shape[-1] == 2:
        y0 = jax.nn.sigmoid(z[:, 0])[:, None]
        y1 = jnp.tanh(z[:, 1])[:, None]
        return jnp.concatenate([y0, y1], axis=1)
    return jax.nn.sigmoid(z)


if __name__ == "__main__":
    nx, ny = 8, 2
    batch = 8

    key = jax.random.PRNGKey(0)
    key, kx = jax.random.split(key)
    x = jax.random.normal(kx, (batch, nx), dtype=jnp.float32)
    params = init_params(key, nx=nx, ny=ny)

    out = mlp_forward(x, params)
    out = jax.block_until_ready(out)

    ref = _reference_forward(x, params)
    assert out.shape == (batch, ny), out.shape
    assert jnp.allclose(out, ref, atol=1e-5, rtol=1e-5), (out, ref)

    print("KERNEL_OK")
</pallas_src>

<mosaic_0001>
module attributes {stable_mosaic.version = 11 : i64} {
  func.func @_mlp_kernel(%arg0: i32, %arg1: memref<8x128xf32, #tpu.memory_space<vmem>>, %arg2: memref<16x8xf32, #tpu.memory_space<vmem>>, %arg3: memref<16x1xf32, #tpu.memory_space<vmem>>, %arg4: memref<32x16xf32, #tpu.memory_space<vmem>>, %arg5: memref<32x1xf32, #tpu.memory_space<vmem>>, %arg6: memref<24x32xf32, #tpu.memory_space<vmem>>, %arg7: memref<24x1xf32, #tpu.memory_space<vmem>>, %arg8: memref<2x24xf32, #tpu.memory_space<vmem>>, %arg9: memref<2x1xf32, #tpu.memory_space<vmem>>, %arg10: memref<2x128xf32, #tpu.memory_space<vmem>>) attributes {dimension_semantics = [#tpu.dimension_semantics<parallel>], iteration_bounds = array<i64: 1>, scalar_prefetch = 0 : i64, scratch_operands = 0 : i64, tpu.core_type = #tpu.core_type<tc>, window_params = [{transform_indices = @transform_0, window_bounds = array<i64: 8, 128>}, {pipeline_mode = #tpu.pipeline_mode<synchronous>, transform_indices = @transform_1, window_bounds = array<i64: 16, 8>}, {pipeline_mode = #tpu.pipeline_mode<synchronous>, transform_indices = @transform_2, window_bounds = array<i64: 16, 1>}, {pipeline_mode = #tpu.pipeline_mode<synchronous>, transform_indices = @transform_3, window_bounds = array<i64: 32, 16>}, {pipeline_mode = #tpu.pipeline_mode<synchronous>, transform_indices = @transform_4, window_bounds = array<i64: 32, 1>}, {pipeline_mode = #tpu.pipeline_mode<synchronous>, transform_indices = @transform_5, window_bounds = array<i64: 24, 32>}, {pipeline_mode = #tpu.pipeline_mode<synchronous>, transform_indices = @transform_6, window_bounds = array<i64: 24, 1>}, {pipeline_mode = #tpu.pipeline_mode<synchronous>, transform_indices = @transform_7, window_bounds = array<i64: 2, 24>}, {pipeline_mode = #tpu.pipeline_mode<synchronous>, transform_indices = @transform_8, window_bounds = array<i64: 2, 1>}, {transform_indices = @transform_9, window_bounds = array<i64: 2, 128>}]} {
    %c0 = arith.constant 0 : index
    %c0_0 = arith.constant 0 : index
    %0 = vector.load %arg1[%c0, %c0_0] : memref<8x128xf32, #tpu.memory_space<vmem>>, vector<8x128xf32>
    %c0_1 = arith.constant 0 : index
    %c0_2 = arith.constant 0 : index
    %1 = vector.load %arg2[%c0_1, %c0_2] : memref<16x8xf32, #tpu.memory_space<vmem>>, vector<16x8xf32>
    %cst = arith.constant dense<0.000000e+00> : vector<16x128xf32>
    %2 = tpu.matmul %1, %0, %cst {dimension_numbers = #tpu.dot_dimension_numbers<[1], [0], [0], [1], [0, 0, 1, 1], [], []>} : vector<16x8xf32>, vector<8x128xf32>, vector<16x128xf32> -> vector<16x128xf32>
    %c0_3 = arith.constant 0 : index
    %c0_4 = arith.constant 0 : index
    %3 = vector.load %arg3[%c0_3, %c0_4] : memref<16x1xf32, #tpu.memory_space<vmem>>, vector<16x1xf32>
    %4 = vector.broadcast %3 : vector<16x1xf32> to vector<16x128xf32>
    %5 = arith.addf %2, %4 : vector<16x128xf32>
    %cst_5 = arith.constant 0.000000e+00 : f32
    %6 = vector.broadcast %cst_5 : f32 to vector<16x128xf32>
    %7 = arith.maximumf %5, %6 : vector<16x128xf32>
    %c0_6 = arith.constant 0 : index
    %c0_7 = arith.constant 0 : index
    %8 = vector.load %arg4[%c0_6, %c0_7] : memref<32x16xf32, #tpu.memory_space<vmem>>, vector<32x16xf32>
    %cst_8 = arith.constant dense<0.000000e+00> : vector<32x128xf32>
    %9 = tpu.matmul %8, %7, %cst_8 {dimension_numbers = #tpu.dot_dimension_numbers<[1], [0], [0], [1], [0, 0, 1, 1], [], []>} : vector<32x16xf32>, vector<16x128xf32>, vector<32x128xf32> -> vector<32x128xf32>
    %c0_9 = arith.constant 0 : index
    %c0_10 = arith.constant 0 : index
    %10 = vector.load %arg5[%c0_9, %c0_10] : memref<32x1xf32, #tpu.memory_space<vmem>>, vector<32x1xf32>
    %11 = vector.broadcast %10 : vector<32x1xf32> to vector<32x128xf32>
    %12 = arith.addf %9, %11 : vector<32x128xf32>
    %cst_11 = arith.constant 0.000000e+00 : f32
    %13 = vector.broadcast %cst_11 : f32 to vector<32x128xf32>
    %14 = arith.maximumf %12, %13 : vector<32x128xf32>
    %c0_12 = arith.constant 0 : index
    %c0_13 = arith.constant 0 : index
    %15 = vector.load %arg6[%c0_12, %c0_13] : memref<24x32xf32, #tpu.memory_space<vmem>>, vector<24x32xf32>
    %cst_14 = arith.constant dense<0.000000e+00> : vector<24x128xf32>
    %16 = tpu.matmul %15, %14, %cst_14 {dimension_numbers = #tpu.dot_dimension_numbers<[1], [0], [0], [1], [0, 0, 1, 1], [], []>} : vector<24x32xf32>, vector<32x128xf32>, vector<24x128xf32> -> vector<24x128xf32>
    %c0_15 = arith.constant 0 : index
    %c0_16 = arith.constant 0 : index
    %17 = vector.load %arg7[%c0_15, %c0_16] : memref<24x1xf32, #tpu.memory_space<vmem>>, vector<24x1xf32>
    %18 = vector.broadcast %17 : vector<24x1xf32> to vector<24x128xf32>
    %19 = arith.addf %16, %18 : vector<24x128xf32>
    %cst_17 = arith.constant 0.000000e+00 : f32
    %20 = vector.broadcast %cst_17 : f32 to vector<24x128xf32>
    %21 = arith.maximumf %19, %20 : vector<24x128xf32>
    %c0_18 = arith.constant 0 : index
    %c0_19 = arith.constant 0 : index
    %22 = vector.load %arg8[%c0_18, %c0_19] : memref<2x24xf32, #tpu.memory_space<vmem>>, vector<2x24xf32>
    %cst_20 = arith.constant dense<0.000000e+00> : vector<2x128xf32>
    %23 = tpu.matmul %22, %21, %cst_20 {dimension_numbers = #tpu.dot_dimension_numbers<[1], [0], [0], [1], [0, 0, 1, 1], [], []>} : vector<2x24xf32>, vector<24x128xf32>, vector<2x128xf32> -> vector<2x128xf32>
    %c0_21 = arith.constant 0 : index
    %c0_22 = arith.constant 0 : index
    %24 = vector.load %arg9[%c0_21, %c0_22] : memref<2x1xf32, #tpu.memory_space<vmem>>, vector<2x1xf32>
    %25 = vector.broadcast %24 : vector<2x1xf32> to vector<2x128xf32>
    %26 = arith.addf %23, %25 : vector<2x128xf32>
    %27 = tpu.iota {dimensions = array<i32: 0>} : vector<2x128xi32>
    %c0_i32 = arith.constant 0 : i32
    %28 = vector.broadcast %c0_i32 : i32 to vector<2x128xi32>
    %29 = arith.cmpi eq, %27, %28 : vector<2x128xi32>
    %cst_23 = arith.constant 2.000000e+00 : f32
    %30 = vector.broadcast %cst_23 : f32 to vector<2x128xf32>
    %31 = arith.mulf %30, %26 : vector<2x128xf32>
    %32 = arith.select %29, %26, %31 : vector<2x128xi1>, vector<2x128xf32>
    %33 = arith.negf %32 : vector<2x128xf32>
    %34 = math.exp %33 : vector<2x128xf32>
    %cst_24 = arith.constant 1.000000e+00 : f32
    %35 = vector.broadcast %cst_24 : f32 to vector<2x128xf32>
    %36 = arith.addf %35, %34 : vector<2x128xf32>
    %37 = arith.divf %35, %36 : vector<2x128xf32>
    %cst_25 = arith.constant 2.000000e+00 : f32
    %38 = vector.broadcast %cst_25 : f32 to vector<2x128xf32>
    %39 = arith.mulf %38, %37 : vector<2x128xf32>
    %cst_26 = arith.constant 1.000000e+00 : f32
    %40 = vector.broadcast %cst_26 : f32 to vector<2x128xf32>
    %41 = arith.subf %39, %40 : vector<2x128xf32>
    %42 = arith.select %29, %37, %41 : vector<2x128xi1>, vector<2x128xf32>
    %c0_27 = arith.constant 0 : index
    %c0_28 = arith.constant 0 : index
    %43 = vector.load %arg10[%c0_27, %c0_28] : memref<2x128xf32, #tpu.memory_space<vmem>>, vector<2x128xf32>
    tpu.vector_store %arg10[%c0_27, %c0_28], %42 {strides = array<i32>} : memref<2x128xf32, #tpu.memory_space<vmem>>, vector<2x128xf32>,
    return
  }
  func.func @transform_0(%arg0: i32) -> (i32, i32) {
    %c0_i32 = arith.constant 0 : i32
    %c0_i32_0 = arith.constant 0 : i32
    return %c0_i32, %arg0 : i32, i32
  }
  func.func @transform_1(%arg0: i32) -> (i32, i32) {
    %c0_i32 = arith.constant 0 : i32
    %c0_i32_0 = arith.constant 0 : i32
    %c0_i32_1 = arith.constant 0 : i32
    return %c0_i32, %c0_i32_0 : i32, i32
  }
  func.func @transform_2(%arg0: i32) -> (i32, i32) {
    %c0_i32 = arith.constant 0 : i32
    %c0_i32_0 = arith.constant 0 : i32
    %c0_i32_1 = arith.constant 0 : i32
    return %c0_i32, %c0_i32_0 : i32, i32
  }
  func.func @transform_3(%arg0: i32) -> (i32, i32) {
    %c0_i32 = arith.constant 0 : i32
    %c0_i32_0 = arith.constant 0 : i32
    %c0_i32_1 = arith.constant 0 : i32
    return %c0_i32, %c0_i32_0 : i32, i32
  }
  func.func @transform_4(%arg0: i32) -> (i32, i32) {
    %c0_i32 = arith.constant 0 : i32
    %c0_i32_0 = arith.constant 0 : i32
    %c0_i32_1 = arith.constant 0 : i32
    return %c0_i32, %c0_i32_0 : i32, i32
  }
  func.func @transform_5(%arg0: i32) -> (i32, i32) {
    %c0_i32 = arith.constant 0 : i32
    %c0_i32_0 = arith.constant 0 : i32
    %c0_i32_1 = arith.constant 0 : i32
    return %c0_i32, %c0_i32_0 : i32, i32
  }
  func.func @transform_6(%arg0: i32) -> (i32, i32) {
    %c0_i32 = arith.constant 0 : i32
    %c0_i32_0 = arith.constant 0 : i32
    %c0_i32_1 = arith.constant 0 : i32
    return %c0_i32, %c0_i32_0 : i32, i32
  }
  func.func @transform_7(%arg0: i32) -> (i32, i32) {
    %c0_i32 = arith.constant 0 : i32
    %c0_i32_0 = arith.constant 0 : i32
    %c0_i32_1 = arith.constant 0 : i32
    return %c0_i32, %c0_i32_0 : i32, i32
  }
  func.func @transform_8(%arg0: i32) -> (i32, i32) {
    %c0_i32 = arith.constant 0 : i32
    %c0_i32_0 = arith.constant 0 : i32
    %c0_i32_1 = arith.constant 0 : i32
    return %c0_i32, %c0_i32_0 : i32, i32
  }
  func.func @transform_9(%arg0: i32) -> (i32, i32) {
    %c0_i32 = arith.constant 0 : i32
    %c0_i32_0 = arith.constant 0 : i32
    return %c0_i32, %arg0 : i32, i32
  }
}

</mosaic_0001>

<llo_original>
// kernel: tpu_custom_call.1
$region0: #{tpu_custom_call.1}
  #allocation0 [shape = 'u32[]', space=smem, size = 0x4, offset = 0x4, fixed_abs, tag = 'smem constant byte address 0x4 - core index']
  #allocation1 [shape = 'u32[72,128]{1,0:T(1,128)}', space=vmem, size = 0x9000, scoped, tag = 'internal scratch']
  %s0 = inlined_call_operand.vmem [shape: f32[8,128], index: 0, kind: input, shape index: {}]
  %s1 = inlined_call_operand.vmem [shape: f32[16,8], index: 1, kind: input, shape index: {}]
  %s2 = inlined_call_operand.vmem [shape: f32[16,1], index: 2, kind: input, shape index: {}]
  %s3 = inlined_call_operand.vmem [shape: f32[32,16], index: 3, kind: input, shape index: {}]
  %s4 = inlined_call_operand.vmem [shape: f32[32,1], index: 4, kind: input, shape index: {}]
  %s5 = inlined_call_operand.vmem [shape: f32[24,32], index: 5, kind: input, shape index: {}]
  %s6 = inlined_call_operand.vmem [shape: f32[24,1], index: 6, kind: input, shape index: {}]
  %s7 = inlined_call_operand.vmem [shape: f32[2,24], index: 7, kind: input, shape index: {}]
  %s8 = inlined_call_operand.vmem [shape: f32[2,1], index: 8, kind: input, shape index: {}]
  %s9 = inlined_call_operand.hbm [shape: f32[2,128], index: 9, kind: output, shape index: {}]
  %s10 = sld [smem:[#allocation0]]
  $region46: #{tpu_custom_call.1} parent=0
    _
  %s12 = ssub.s32 1, %s10
  %s13 = scalar_select 0, %s12, %s10
  $region1: #{tpu_custom_call.1} parent=0
    #allocation2 [shape = 'u8[1024]{0}', space=vmem, size = 0x400, scoped, tag = 'output window, operand 0, single buffered']
    #allocation3 [shape = 's32[1]{0}', space=sflag, size = 0x4, scoped, tag = 'scoped memory for tpu_custom_call.1']
    %14 = vsyncpa [#allocation3], 0
    // Predicated region
    $region2: #{tpu_custom_call.1} parent=1 // pred_check
      _
    $region3: #{tpu_custom_call.1} parent=1 // pred_check_branch
      %16 = sbr.rel (0) target = $region5
    $region4: #{tpu_custom_call.1} parent=1 // pred_region
      _
    $region5: #{tpu_custom_call.1} parent=1 // pred_fallthru
      _
    // Predicated region
    $region6: #{tpu_custom_call.1} parent=1 // pred_check
      _
    $region7: #{tpu_custom_call.1} parent=1 // pred_check_branch
      %18 = sbr.rel (0) target = $region9
    $region8: #{tpu_custom_call.1} parent=1 // pred_region
      _
    $region9: #{tpu_custom_call.1} parent=1 // pred_fallthru
      _
    // Predicated region
    $region10: #{tpu_custom_call.1} parent=1 // pred_check
      _
    $region11: #{tpu_custom_call.1} parent=1 // pred_check_branch
      %20 = sbr.rel (0) target = $region13
    $region12: #{tpu_custom_call.1} parent=1 // pred_region
      _
    $region13: #{tpu_custom_call.1} parent=1 // pred_fallthru
      _
    // Predicated region
    $region14: #{tpu_custom_call.1} parent=1 // pred_check
      _
    $region15: #{tpu_custom_call.1} parent=1 // pred_check_branch
      %22 = sbr.rel (0) target = $region17
    $region16: #{tpu_custom_call.1} parent=1 // pred_region
      _
    $region17: #{tpu_custom_call.1} parent=1 // pred_fallthru
      _
    // Predicated region
    $region18: #{tpu_custom_call.1} parent=1 // pred_check
      _
    $region19: #{tpu_custom_call.1} parent=1 // pred_check_branch
      %24 = sbr.rel (0) target = $region21
    $region20: #{tpu_custom_call.1} parent=1 // pred_region
      _
    $region21: #{tpu_custom_call.1} parent=1 // pred_fallthru
      _
    // Predicated region
    $region22: #{tpu_custom_call.1} parent=1 // pred_check
      _
    $region23: #{tpu_custom_call.1} parent=1 // pred_check_branch
      %26 = sbr.rel (0) target = $region25
    $region24: #{tpu_custom_call.1} parent=1 // pred_region
      _
    $region25: #{tpu_custom_call.1} parent=1 // pred_fallthru
      _
    // Predicated region
    $region26: #{tpu_custom_call.1} parent=1 // pred_check
      _
    $region27: #{tpu_custom_call.1} parent=1 // pred_check_branch
      %28 = sbr.rel (0) target = $region29
    $region28: #{tpu_custom_call.1} parent=1 // pred_region
      _
    $region29: #{tpu_custom_call.1} parent=1 // pred_fallthru
      _
    // Predicated region
    $region30: #{tpu_custom_call.1} parent=1 // pred_check
      _
    $region31: #{tpu_custom_call.1} parent=1 // pred_check_branch
      %30 = sbr.rel (0) target = $region33
    $region32: #{tpu_custom_call.1} parent=1 // pred_region
      _
    $region33: #{tpu_custom_call.1} parent=1 // pred_fallthru
      _
    // Predicated region
    $region34: #{tpu_custom_call.1} parent=1 // pred_check
      _
    $region35: #{tpu_custom_call.1} parent=1 // pred_check_branch
      %32 = sbr.rel (0) target = $region37
    $region36: #{tpu_custom_call.1} parent=1 // pred_region
      _
    $region37: #{tpu_custom_call.1} parent=1 // pred_fallthru
      _
    %v33 = vld [vmem:[%s0] sm:$0xff]
    %v34 = vld [vmem:[%s1] sm:$0xff]
    %v35 = vld [vmem:[%s1 + $0x8] sm:$0xff]
    %v36 = vld [vmem:[%s2] sm:$0xff]
    %v37 = vld [vmem:[%s2 + $0x8] sm:$0xff]
    %39 = vset.pattern.permute.xlu0 0
    %40 = vperm.xlu0 %39, %v36
    %v41 = vpop.permute.xlu0 %40
    %44 = vset.pattern.permute.xlu0 0
    %45 = vperm.xlu0 %44, %v37
    %v46 = vpop.permute.xlu0 %45
    %vm48 = vcmask 64512
    %v50 = vsel %vm48, %v34, 0
    %v53 = vsel %vm48, %v35, 0
    %55 = vmatpush.msra.mxu0 0.0
    %56 = vmatpush.msra.mxu0 0.0
    %57 = vmatpush.msra.mxu0 0.0
    %58 = vmatpush.msra.mxu0 0.0
    %59 = vmatpush.msra.mxu0 0.0
    %60 = vmatpush.msra.mxu0 0.0
    %61 = vmatpush.msra.mxu0 0.0
    %62 = vmatpush.msra.mxu0 0.0
    %63 = vmatpush.msra.mxu0 0.0
    %64 = vmatpush.msra.mxu0 0.0
    %65 = vmatpush.msra.mxu0 0.0
    %66 = vmatpush.msra.mxu0 0.0
    %67 = vmatpush.msra.mxu0 0.0
    %68 = vmatpush.msra.mxu0 0.0
    %69 = vmatpush.msra.mxu0 0.0
    %70 = vmatpush.msra.mxu0 %v33
    %71 = vmatmul.f32.gmra.mxu0 %v50
    %v72 = vpop.f32.mrf.mxu0
    %v73 = vadd.f32 %v41, %v72
    %74 = vmatmul.f32.gmra.mxu0 %v53
    %v75 = vpop.f32.mrf.mxu0
    %v76 = vadd.f32 %v46, %v75
    %77 = vdwg.mxu0
    %v78 = vmax.f32 %v73, 0.0
    %v79 = vmax.f32 %v76, 0.0
    %v80 = vld [vmem:[%s3] sm:$0xff]
    %v81 = vld [vmem:[%s3 + $0x8] sm:$0xff]
    %v82 = vld [vmem:[%s3 + $0x10] sm:$0xff]
    %v83 = vld [vmem:[%s3 + $0x18] sm:$0xff]
    %v84 = vld [vmem:[%s4] sm:$0xff]
    %v85 = vld [vmem:[%s4 + $0x8] sm:$0xff]
    %v86 = vld [vmem:[%s4 + $0x10] sm:$0xff]
    %v87 = vld [vmem:[%s4 + $0x18] sm:$0xff]
    %89 = vset.pattern.permute.xlu0 0
    %90 = vperm.xlu0 %89, %v84
    %v91 = vpop.permute.xlu0 %90
    %94 = vset.pattern.permute.xlu0 0
    %95 = vperm.xlu0 %94, %v85
    %v96 = vpop.permute.xlu0 %95
    %99 = vset.pattern.permute.xlu0 0
    %100 = vperm.xlu0 %99, %v86
    %v101 = vpop.permute.xlu0 %100
    %104 = vset.pattern.permute.xlu0 0
    %105 = vperm.xlu0 %104, %v87
    %v106 = vpop.permute.xlu0 %105
    %vm108 = vcmask 130048
    %v110 = vsel %vm108, %v80, 0
    %v113 = vsel %vm108, %v81, 0
    %v116 = vsel %vm108, %v82, 0
    %v119 = vsel %vm108, %v83, 0
    %121 = vmatpush.msra.mxu0 0.0
    %122 = vmatpush.msra.mxu0 0.0
    %123 = vmatpush.msra.mxu0 0.0
    %124 = vmatpush.msra.mxu0 0.0
    %125 = vmatpush.msra.mxu0 0.0
    %126 = vmatpush.msra.mxu0 0.0
    %127 = vmatpush.msra.mxu0 0.0
    %128 = vmatpush.msra.mxu0 0.0
    %129 = vmatpush.msra.mxu0 0.0
    %130 = vmatpush.msra.mxu0 0.0
    %131 = vmatpush.msra.mxu0 0.0
    %132 = vmatpush.msra.mxu0 0.0
    %133 = vmatpush.msra.mxu0 0.0
    %134 = vmatpush.msra.mxu0 0.0
    %135 = vmatpush.msra.mxu0 %v79
    %136 = vmatpush.msra.mxu0 %v78
    %137 = vmatmul.f32.gmra.mxu0 %v110
    %v138 = vpop.f32.mrf.mxu0
    %v139 = vadd.f32 %v91, %v138
    %140 = vmatmul.f32.gmra.mxu0 %v113
    %v141 = vpop.f32.mrf.mxu0
    %v142 = vadd.f32 %v96, %v141
    %143 = vmatmul.f32.gmra.mxu0 %v116
    %v144 = vpop.f32.mrf.mxu0
    %v145 = vadd.f32 %v101, %v144
    %146 = vmatmul.f32.gmra.mxu0 %v119
    %v147 = vpop.f32.mrf.mxu0
    %v148 = vadd.f32 %v106, %v147
    %149 = vdwg.mxu0
    %v150 = vmax.f32 %v139, 0.0
    %v151 = vmax.f32 %v142, 0.0
    %v152 = vmax.f32 %v145, 0.0
    %v153 = vmax.f32 %v148, 0.0
    %v154 = vld [vmem:[%s5] sm:$0xff]
    %v155 = vld [vmem:[%s5 + $0x8] sm:$0xff]
    %v156 = vld [vmem:[%s5 + $0x10] sm:$0xff]
    %v157 = vld [vmem:[%s6] sm:$0xff]
    %v158 = vld [vmem:[%s6 + $0x8] sm:$0xff]
    %v159 = vld [vmem:[%s6 + $0x10] sm:$0xff]
    %161 = vset.pattern.permute.xlu0 0
    %162 = vperm.xlu0 %161, %v157
    %v163 = vpop.permute.xlu0 %162
    %166 = vset.pattern.permute.xlu0 0
    %167 = vperm.xlu0 %166, %v158
    %v168 = vpop.permute.xlu0 %167
    %171 = vset.pattern.permute.xlu0 0
    %172 = vperm.xlu0 %171, %v159
    %v173 = vpop.permute.xlu0 %172
    %vm175 = vcmask 261120
    %v177 = vsel %vm175, %v154, 0
    %v180 = vsel %vm175, %v155, 0
    %v183 = vsel %vm175, %v156, 0
    %185 = vmatpush.msra.mxu0 0.0
    %186 = vmatpush.msra.mxu0 0.0
    %187 = vmatpush.msra.mxu0 0.0
    %188 = vmatpush.msra.mxu0 0.0
    %189 = vmatpush.msra.mxu0 0.0
    %190 = vmatpush.msra.mxu0 0.0
    %191 = vmatpush.msra.mxu0 0.0
    %192 = vmatpush.msra.mxu0 0.0
    %193 = vmatpush.msra.mxu0 0.0
    %194 = vmatpush.msra.mxu0 0.0
    %195 = vmatpush.msra.mxu0 0.0
    %196 = vmatpush.msra.mxu0 0.0
    %197 = vmatpush.msra.mxu0 %v153
    %198 = vmatpush.msra.mxu0 %v152
    %199 = vmatpush.msra.mxu0 %v151
    %200 = vmatpush.msra.mxu0 %v150
    %201 = vmatmul.f32.gmra.mxu0 %v177
    %v202 = vpop.f32.mrf.mxu0
    %v203 = vadd.f32 %v163, %v202
    %204 = vmatmul.f32.gmra.mxu0 %v180
    %v205 = vpop.f32.mrf.mxu0
    %v206 = vadd.f32 %v168, %v205
    %207 = vmatmul.f32.gmra.mxu0 %v183
    %v208 = vpop.f32.mrf.mxu0
    %v209 = vadd.f32 %v173, %v208
    %210 = vdwg.mxu0
    %v211 = vmax.f32 %v203, 0.0
    %v212 = vmax.f32 %v206, 0.0
    %v213 = vmax.f32 %v209, 0.0
    %v214 = vld [vmem:[%s7] sm:$0x3]
    %v215 = vld [vmem:[%s8] sm:$0x3]
    %217 = vset.pattern.permute.xlu0 0
    %218 = vperm.xlu0 %217, %v215
    %v219 = vpop.permute.xlu0 %218
    %vm221 = vcmask 195584
    %v223 = vsel %vm221, %v214, 0
    %225 = vmatpush.msra.mxu0 0.0
    %226 = vmatpush.msra.mxu0 0.0
    %227 = vmatpush.msra.mxu0 0.0
    %228 = vmatpush.msra.mxu0 0.0
    %229 = vmatpush.msra.mxu0 0.0
    %230 = vmatpush.msra.mxu0 0.0
    %231 = vmatpush.msra.mxu0 0.0
    %232 = vmatpush.msra.mxu0 0.0
    %233 = vmatpush.msra.mxu0 0.0
    %234 = vmatpush.msra.mxu0 0.0
    %235 = vmatpush.msra.mxu0 0.0
    %236 = vmatpush.msra.mxu0 0.0
    %237 = vmatpush.msra.mxu0 0.0
    %238 = vmatpush.msra.mxu0 %v213
    %239 = vmatpush.msra.mxu0 %v212
    %240 = vmatpush.msra.mxu0 %v211
    %241 = vmatmul.f32.gmra.mxu0 %v223
    %v242 = vpop.f32.mrf.mxu0
    %v243 = vadd.f32 %v219, %v242
    %244 = vdwg.mxu0
    %v245 = vlaneseq
    %v246 = vshrl.u32 %v245, 7
    %vm247 = vcmp.eq.s32.totalorder %v246, 0
    %v248 = vmul.f32 %v243, 2.0
    %v249 = vsel %vm247, %v243, %v248
    %v250 = vxor.u32 %v249, 2147483648
    %v251 = vmul.f32 %v250, 1.442695
    %v252 = vpow.pop %v251
    %v253 = vadd.f32 %v252, 1.0
    %v254 = vrcp.pop %v253
    %v255 = vmul.f32 %v253, %v254
    %v256 = vsub.f32 1.0, %v255
    %v257 = vmul.f32 %v254, %v256
    %v258 = vadd.f32 %v254, %v257
    %vm259 = vweird.f32 %v253
    %vm260 = vweird.f32 %v254
    %vm261 = vmor %vm259, %vm260
    %v262 = vsel %vm261, %v254, %v258
    %v263 = vand.u32 2147483647, %v253
    %vm264 = vcmp.eq.f32.partialorder %v263, 8.507059e+37
    %v265 = vand.u32 %v253, 2147483648
    %v266 = vor.u32 1.1754944e-38, %v265
    %v267 = vsel %vm264, %v266, %v262
    %v268 = vmul.f32 1.0, %v267
    %v269 = vmul.f32 %v268, 2.0
    %v270 = vsub.f32 %v269, 1.0
    %v271 = vsel %vm247, %v268, %v270
    %272 = vst [vmem:[#allocation2] sm:$0x3] %v271
    // Predicated region
    $region38: #{tpu_custom_call.1} parent=1 // pred_check
      _
    $region39: #{tpu_custom_call.1} parent=1 // pred_check_branch
      %274 = sbr.rel (0) target = $region41
    $region40: #{tpu_custom_call.1} parent=1 // pred_region
      %276 = vsyncadd [#allocation3], 0
      %s278 = sshll.u32 [#allocation2], 4
      %s279 = int_to_ptr.vmem [resolvable:$true] %s278
      %s280 = sshll.u32 %s9, 4
      %s281 = int_to_ptr.hbm [resolvable:$true] %s280
      %283 = dma.vmem_to_hbm [thread:$0]  %s279, 32, %s281, [#allocation3]
    $region41: #{tpu_custom_call.1} parent=1 // pred_fallthru
      _
    // Predicated region
    $region42: #{tpu_custom_call.1} parent=1 // pred_check
      _
    $region43: #{tpu_custom_call.1} parent=1 // pred_check_branch
      %285 = sbr.rel (0) target = $region45
    $region44: #{tpu_custom_call.1} parent=1 // pred_region
      %287 = dma.done [#allocation3], 32
    $region45: #{tpu_custom_call.1} parent=1 // pred_fallthru
      _
    %288 = vsyncpa [#allocation3], 1

</llo_original>
